<compile_context>
chip_gen: v5e
topology: v5e:2x2
jax: 0.10.0
libtpu: 0.0.40
codegen_flags: <defaults>
</compile_context>

<pallas_src>
import jax
import jax.numpy as jnp
from jax.experimental import pallas as pl
from jax.experimental.pallas import tpu as pltpu


# Packed-parameter slab layout (rows of a (16, 4) f32 array).
_W1_ROWS = (0, 6)    # rows 0..5  : W1 (6, 4)
_B1_ROW = 6          # row  6     : b1 (4,)
_W2_ROWS = (8, 12)   # rows 8..11 : W2 (4, 4)
_B2_ROW = 12         # row 12     : b2 (4,)


def _mlp_stack_kernel(xT_ref, p_ref, oT_ref):
    # xT_ref : (6, TB)  f32 in VMEM  -- batch on the lane axis
    # p_ref  : (16, 4)  f32 in SMEM  -- packed params, scalar reads
    # oT_ref : (8, TB)  f32 in VMEM  -- rows 0-3 = y^T, rows 4-7 = y^T (dup)
    x = xT_ref[...]
    tb = x.shape[1]

    # ---- Linear(6, 4) + ReLU : one lane-wide row per output feature -------
    h_rows = []
    for n in range(4):
        acc = jnp.full((1, tb), p_ref[_B1_ROW, n], dtype=jnp.float32)
        for k in range(6):
            acc = acc + p_ref[_W1_ROWS[0] + k, n] * x[k:k + 1, :]
        h_rows.append(jnp.maximum(acc, 0.0))
    # Flatten(start_dim=1) is a no-op on a 2-D activation.

    # ---- Linear(4, 4) ------------------------------------------------------
    y_rows = []
    for n in range(4):
        acc = jnp.full((1, tb), p_ref[_B2_ROW, n], dtype=jnp.float32)
        for k in range(4):
            acc = acc + p_ref[_W2_ROWS[0] + k, n] * h_rows[k]
        y_rows.append(acc)

    # stack([y, y], dim=1).flatten(1) == [y | y] along features == sublane
    # rows 0-3 and 4-7 of the transposed output.  Single full-block store.
    yT = jnp.concatenate(y_rows + y_rows, axis=0)          # (8, TB)
    oT_ref[...] = yT.astype(oT_ref.dtype)


def pack_params(w1, b1, w2, b2):
    """Pack the four Linear parameters into one contiguous (16, 4) f32 slab."""
    slab = jnp.zeros((16, 4), dtype=jnp.float32)
    slab = slab.at[_W1_ROWS[0]:_W1_ROWS[1], :].set(w1.astype(jnp.float32))
    slab = slab.at[_B1_ROW, :].set(b1.reshape(-1).astype(jnp.float32))
    slab = slab.at[_W2_ROWS[0]:_W2_ROWS[1], :].set(w2.astype(jnp.float32))
    slab = slab.at[_B2_ROW, :].set(b2.reshape(-1).astype(jnp.float32))
    return slab


def model_forward(x, params_slab, *, tb=512):
    """x: (B, 6) f32  ->  (B, 8) f32."""
    B = x.shape[0]
    # Layout plumbing in the wrapper: batch onto the lane axis.
    xT = jnp.transpose(x).astype(jnp.float32)               # (6, B)

    smem_spec = pl.BlockSpec(memory_space=pltpu.MemorySpace.SMEM)

    if B <= tb:
        # Single block; block shape == full array shape (legal for any B).
        Bp = B
        grid = (1,)
        in_specs = [pl.BlockSpec((6, Bp), lambda i: (0, 0)), smem_spec]
        out_specs = pl.BlockSpec((8, Bp), lambda i: (0, 0))
    else:
        # Batched grid: 512-lane tiles, pad B up to a multiple of TB.
        Bp = tb * pl.cdiv(B, tb)
        if Bp != B:
            xT = jnp.pad(xT, ((0, 0), (0, Bp - B)))
        grid = (Bp // tb,)
        in_specs = [pl.BlockSpec((6, tb), lambda i: (0, i)), smem_spec]
        out_specs = pl.BlockSpec((8, tb), lambda i: (0, i))

    flops = 80 * Bp                               # 2*(6*4) + 2*(4*4) per row
    bytes_accessed = (6 + 8) * 4 * Bp + 16 * 4 * 4

    yT = pl.pallas_call(
        _mlp_stack_kernel,
        out_shape=jax.ShapeDtypeStruct((8, Bp), jnp.float32),
        grid=grid,
        in_specs=in_specs,
        out_specs=out_specs,
        compiler_params=pltpu.CompilerParams(
            dimension_semantics=("parallel",),    # megacore sharding on v7x
        ),
        cost_estimate=pl.CostEstimate(
            flops=flops, transcendentals=0, bytes_accessed=bytes_accessed),
    )(xT, params_slab)

    return jnp.transpose(yT[:, :B])               # (B, 8)


def _reference(x, w1, b1, w2, b2):
    h = jnp.maximum(x @ w1 + b1, 0.0)
    y = h @ w2 + b2
    return jnp.concatenate([y, y], axis=-1)


if __name__ == "__main__":
    key = jax.random.PRNGKey(0)
    k_x, k_w1, k_b1, k_w2, k_b2, k_big = jax.random.split(key, 6)

    # Input matching the reference: x = torch.randn(2, 6)
    x = jax.random.normal(k_x, (2, 6), dtype=jnp.float32)

    # Deterministic parameter init (uniform like torch Linear default bounds).
    bound1 = 1.0 / jnp.sqrt(6.0)
    w1 = jax.random.uniform(k_w1, (6, 4), minval=-bound1, maxval=bound1,
                            dtype=jnp.float32)
    b1 = jax.random.uniform(k_b1, (1, 4), minval=-bound1, maxval=bound1,
                            dtype=jnp.float32)
    bound2 = 1.0 / jnp.sqrt(4.0)
    w2 = jax.random.uniform(k_w2, (4, 4), minval=-bound2, maxval=bound2,
                            dtype=jnp.float32)
    b2 = jax.random.uniform(k_b2, (1, 4), minval=-bound2, maxval=bound2,
                            dtype=jnp.float32)

    params_slab = pack_params(w1, b1, w2, b2)     # packed once at init time

    # --- small path (matches the PyTorch spec: B=2) -------------------------
    out = model_forward(x, params_slab)
    jax.block_until_ready(out)
    ref = _reference(x, w1, b1, w2, b2)
    assert out.shape == (2, 8)
    assert jnp.allclose(out, ref, atol=1e-5), "mismatch vs reference (B=2)"

    # --- batched path (exercises the 512-lane 'parallel' grid + padding) ----
    x_big = jax.random.normal(k_big, (1280, 6), dtype=jnp.float32)
    out_big = model_forward(x_big, params_slab)
    jax.block_until_ready(out_big)
    ref_big = _reference(x_big, w1, b1, w2, b2)
    assert out_big.shape == (1280, 8)
    assert jnp.allclose(out_big, ref_big, atol=1e-5), "mismatch (batched)"

    print("KERNEL_OK")
</pallas_src>

<mosaic_0001>
module attributes {stable_mosaic.version = 11 : i64} {
  func.func @_mlp_stack_kernel(%arg0: i32, %arg1: memref<6x2xf32, #tpu.memory_space<vmem>>, %arg2: memref<16x4xf32, #tpu.memory_space<smem>>, %arg3: memref<8x2xf32, #tpu.memory_space<vmem>>) attributes {dimension_semantics = [#tpu.dimension_semantics<parallel>], iteration_bounds = array<i64: 1>, scalar_prefetch = 0 : i64, scratch_operands = 0 : i64, tpu.core_type = #tpu.core_type<tc>, window_params = [{pipeline_mode = #tpu.pipeline_mode<synchronous>, transform_indices = @transform_0, window_bounds = array<i64: 6, 2>}, {transform_indices = @transform_1, window_bounds = array<i64: 16, 4>}, {pipeline_mode = #tpu.pipeline_mode<synchronous>, transform_indices = @transform_2, window_bounds = array<i64: 8, 2>}]} {
    %c0 = arith.constant 0 : index
    %c0_0 = arith.constant 0 : index
    %0 = vector.load %arg1[%c0, %c0_0] : memref<6x2xf32, #tpu.memory_space<vmem>>, vector<6x2xf32>
    %c6 = arith.constant 6 : index
    %c0_1 = arith.constant 0 : index
    %1 = memref.load %arg2[%c6, %c0_1] : memref<16x4xf32, #tpu.memory_space<smem>>
    %2 = vector.broadcast %1 : f32 to vector<1x2xf32>
    %c0_2 = arith.constant 0 : index
    %c0_3 = arith.constant 0 : index
    %3 = memref.load %arg2[%c0_2, %c0_3] : memref<16x4xf32, #tpu.memory_space<smem>>
    %4 = vector.extract_strided_slice %0 {offsets = [0, 0], sizes = [1, 2], strides = [1, 1]} : vector<6x2xf32> to vector<1x2xf32>
    %5 = vector.broadcast %3 : f32 to vector<1x2xf32>
    %6 = arith.mulf %5, %4 : vector<1x2xf32>
    %7 = arith.addf %2, %6 : vector<1x2xf32>
    %c1 = arith.constant 1 : index
    %c0_4 = arith.constant 0 : index
    %8 = memref.load %arg2[%c1, %c0_4] : memref<16x4xf32, #tpu.memory_space<smem>>
    %9 = vector.extract_strided_slice %0 {offsets = [1, 0], sizes = [1, 2], strides = [1, 1]} : vector<6x2xf32> to vector<1x2xf32>
    %10 = vector.broadcast %8 : f32 to vector<1x2xf32>
    %11 = arith.mulf %10, %9 : vector<1x2xf32>
    %12 = arith.addf %7, %11 : vector<1x2xf32>
    %c2 = arith.constant 2 : index
    %c0_5 = arith.constant 0 : index
    %13 = memref.load %arg2[%c2, %c0_5] : memref<16x4xf32, #tpu.memory_space<smem>>
    %14 = vector.extract_strided_slice %0 {offsets = [2, 0], sizes = [1, 2], strides = [1, 1]} : vector<6x2xf32> to vector<1x2xf32>
    %15 = vector.broadcast %13 : f32 to vector<1x2xf32>
    %16 = arith.mulf %15, %14 : vector<1x2xf32>
    %17 = arith.addf %12, %16 : vector<1x2xf32>
    %c3 = arith.constant 3 : index
    %c0_6 = arith.constant 0 : index
    %18 = memref.load %arg2[%c3, %c0_6] : memref<16x4xf32, #tpu.memory_space<smem>>
    %19 = vector.extract_strided_slice %0 {offsets = [3, 0], sizes = [1, 2], strides = [1, 1]} : vector<6x2xf32> to vector<1x2xf32>
    %20 = vector.broadcast %18 : f32 to vector<1x2xf32>
    %21 = arith.mulf %20, %19 : vector<1x2xf32>
    %22 = arith.addf %17, %21 : vector<1x2xf32>
    %c4 = arith.constant 4 : index
    %c0_7 = arith.constant 0 : index
    %23 = memref.load %arg2[%c4, %c0_7] : memref<16x4xf32, #tpu.memory_space<smem>>
    %24 = vector.extract_strided_slice %0 {offsets = [4, 0], sizes = [1, 2], strides = [1, 1]} : vector<6x2xf32> to vector<1x2xf32>
    %25 = vector.broadcast %23 : f32 to vector<1x2xf32>
    %26 = arith.mulf %25, %24 : vector<1x2xf32>
    %27 = arith.addf %22, %26 : vector<1x2xf32>
    %c5 = arith.constant 5 : index
    %c0_8 = arith.constant 0 : index
    %28 = memref.load %arg2[%c5, %c0_8] : memref<16x4xf32, #tpu.memory_space<smem>>
    %29 = vector.extract_strided_slice %0 {offsets = [5, 0], sizes = [1, 2], strides = [1, 1]} : vector<6x2xf32> to vector<1x2xf32>
    %30 = vector.broadcast %28 : f32 to vector<1x2xf32>
    %31 = arith.mulf %30, %29 : vector<1x2xf32>
    %32 = arith.addf %27, %31 : vector<1x2xf32>
    %cst = arith.constant 0.000000e+00 : f32
    %33 = vector.broadcast %cst : f32 to vector<1x2xf32>
    %34 = arith.maximumf %32, %33 : vector<1x2xf32>
    %c6_9 = arith.constant 6 : index
    %c1_10 = arith.constant 1 : index
    %35 = memref.load %arg2[%c6_9, %c1_10] : memref<16x4xf32, #tpu.memory_space<smem>>
    %36 = vector.broadcast %35 : f32 to vector<1x2xf32>
    %c0_11 = arith.constant 0 : index
    %c1_12 = arith.constant 1 : index
    %37 = memref.load %arg2[%c0_11, %c1_12] : memref<16x4xf32, #tpu.memory_space<smem>>
    %38 = vector.extract_strided_slice %0 {offsets = [0, 0], sizes = [1, 2], strides = [1, 1]} : vector<6x2xf32> to vector<1x2xf32>
    %39 = vector.broadcast %37 : f32 to vector<1x2xf32>
    %40 = arith.mulf %39, %38 : vector<1x2xf32>
    %41 = arith.addf %36, %40 : vector<1x2xf32>
    %c1_13 = arith.constant 1 : index
    %c1_14 = arith.constant 1 : index
    %42 = memref.load %arg2[%c1_13, %c1_14] : memref<16x4xf32, #tpu.memory_space<smem>>
    %43 = vector.extract_strided_slice %0 {offsets = [1, 0], sizes = [1, 2], strides = [1, 1]} : vector<6x2xf32> to vector<1x2xf32>
    %44 = vector.broadcast %42 : f32 to vector<1x2xf32>
    %45 = arith.mulf %44, %43 : vector<1x2xf32>
    %46 = arith.addf %41, %45 : vector<1x2xf32>
    %c2_15 = arith.constant 2 : index
    %c1_16 = arith.constant 1 : index
    %47 = memref.load %arg2[%c2_15, %c1_16] : memref<16x4xf32, #tpu.memory_space<smem>>
    %48 = vector.extract_strided_slice %0 {offsets = [2, 0], sizes = [1, 2], strides = [1, 1]} : vector<6x2xf32> to vector<1x2xf32>
    %49 = vector.broadcast %47 : f32 to vector<1x2xf32>
    %50 = arith.mulf %49, %48 : vector<1x2xf32>
    %51 = arith.addf %46, %50 : vector<1x2xf32>
    %c3_17 = arith.constant 3 : index
    %c1_18 = arith.constant 1 : index
    %52 = memref.load %arg2[%c3_17, %c1_18] : memref<16x4xf32, #tpu.memory_space<smem>>
    %53 = vector.extract_strided_slice %0 {offsets = [3, 0], sizes = [1, 2], strides = [1, 1]} : vector<6x2xf32> to vector<1x2xf32>
    %54 = vector.broadcast %52 : f32 to vector<1x2xf32>
    %55 = arith.mulf %54, %53 : vector<1x2xf32>
    %56 = arith.addf %51, %55 : vector<1x2xf32>
    %c4_19 = arith.constant 4 : index
    %c1_20 = arith.constant 1 : index
    %57 = memref.load %arg2[%c4_19, %c1_20] : memref<16x4xf32, #tpu.memory_space<smem>>
    %58 = vector.extract_strided_slice %0 {offsets = [4, 0], sizes = [1, 2], strides = [1, 1]} : vector<6x2xf32> to vector<1x2xf32>
    %59 = vector.broadcast %57 : f32 to vector<1x2xf32>
    %60 = arith.mulf %59, %58 : vector<1x2xf32>
    %61 = arith.addf %56, %60 : vector<1x2xf32>
    %c5_21 = arith.constant 5 : index
    %c1_22 = arith.constant 1 : index
    %62 = memref.load %arg2[%c5_21, %c1_22] : memref<16x4xf32, #tpu.memory_space<smem>>
    %63 = vector.extract_strided_slice %0 {offsets = [5, 0], sizes = [1, 2], strides = [1, 1]} : vector<6x2xf32> to vector<1x2xf32>
    %64 = vector.broadcast %62 : f32 to vector<1x2xf32>
    %65 = arith.mulf %64, %63 : vector<1x2xf32>
    %66 = arith.addf %61, %65 : vector<1x2xf32>
    %cst_23 = arith.constant 0.000000e+00 : f32
    %67 = vector.broadcast %cst_23 : f32 to vector<1x2xf32>
    %68 = arith.maximumf %66, %67 : vector<1x2xf32>
    %c6_24 = arith.constant 6 : index
    %c2_25 = arith.constant 2 : index
    %69 = memref.load %arg2[%c6_24, %c2_25] : memref<16x4xf32, #tpu.memory_space<smem>>
    %70 = vector.broadcast %69 : f32 to vector<1x2xf32>
    %c0_26 = arith.constant 0 : index
    %c2_27 = arith.constant 2 : index
    %71 = memref.load %arg2[%c0_26, %c2_27] : memref<16x4xf32, #tpu.memory_space<smem>>
    %72 = vector.extract_strided_slice %0 {offsets = [0, 0], sizes = [1, 2], strides = [1, 1]} : vector<6x2xf32> to vector<1x2xf32>
    %73 = vector.broadcast %71 : f32 to vector<1x2xf32>
    %74 = arith.mulf %73, %72 : vector<1x2xf32>
    %75 = arith.addf %70, %74 : vector<1x2xf32>
    %c1_28 = arith.constant 1 : index
    %c2_29 = arith.constant 2 : index
    %76 = memref.load %arg2[%c1_28, %c2_29] : memref<16x4xf32, #tpu.memory_space<smem>>
    %77 = vector.extract_strided_slice %0 {offsets = [1, 0], sizes = [1, 2], strides = [1, 1]} : vector<6x2xf32> to vector<1x2xf32>
    %78 = vector.broadcast %76 : f32 to vector<1x2xf32>
    %79 = arith.mulf %78, %77 : vector<1x2xf32>
    %80 = arith.addf %75, %79 : vector<1x2xf32>
    %c2_30 = arith.constant 2 : index
    %c2_31 = arith.constant 2 : index
    %81 = memref.load %arg2[%c2_30, %c2_31] : memref<16x4xf32, #tpu.memory_space<smem>>
    %82 = vector.extract_strided_slice %0 {offsets = [2, 0], sizes = [1, 2], strides = [1, 1]} : vector<6x2xf32> to vector<1x2xf32>
    %83 = vector.broadcast %81 : f32 to vector<1x2xf32>
    %84 = arith.mulf %83, %82 : vector<1x2xf32>
    %85 = arith.addf %80, %84 : vector<1x2xf32>
    %c3_32 = arith.constant 3 : index
    %c2_33 = arith.constant 2 : index
    %86 = memref.load %arg2[%c3_32, %c2_33] : memref<16x4xf32, #tpu.memory_space<smem>>
    %87 = vector.extract_strided_slice %0 {offsets = [3, 0], sizes = [1, 2], strides = [1, 1]} : vector<6x2xf32> to vector<1x2xf32>
    %88 = vector.broadcast %86 : f32 to vector<1x2xf32>
    %89 = arith.mulf %88, %87 : vector<1x2xf32>
    %90 = arith.addf %85, %89 : vector<1x2xf32>
    %c4_34 = arith.constant 4 : index
    %c2_35 = arith.constant 2 : index
    %91 = memref.load %arg2[%c4_34, %c2_35] : memref<16x4xf32, #tpu.memory_space<smem>>
    %92 = vector.extract_strided_slice %0 {offsets = [4, 0], sizes = [1, 2], strides = [1, 1]} : vector<6x2xf32> to vector<1x2xf32>
    %93 = vector.broadcast %91 : f32 to vector<1x2xf32>
    %94 = arith.mulf %93, %92 : vector<1x2xf32>
    %95 = arith.addf %90, %94 : vector<1x2xf32>
    %c5_36 = arith.constant 5 : index
    %c2_37 = arith.constant 2 : index
    %96 = memref.load %arg2[%c5_36, %c2_37] : memref<16x4xf32, #tpu.memory_space<smem>>
    %97 = vector.extract_strided_slice %0 {offsets = [5, 0], sizes = [1, 2], strides = [1, 1]} : vector<6x2xf32> to vector<1x2xf32>
    %98 = vector.broadcast %96 : f32 to vector<1x2xf32>
    %99 = arith.mulf %98, %97 : vector<1x2xf32>
    %100 = arith.addf %95, %99 : vector<1x2xf32>
    %cst_38 = arith.constant 0.000000e+00 : f32
    %101 = vector.broadcast %cst_38 : f32 to vector<1x2xf32>
    %102 = arith.maximumf %100, %101 : vector<1x2xf32>
    %c6_39 = arith.constant 6 : index
    %c3_40 = arith.constant 3 : index
    %103 = memref.load %arg2[%c6_39, %c3_40] : memref<16x4xf32, #tpu.memory_space<smem>>
    %104 = vector.broadcast %103 : f32 to vector<1x2xf32>
    %c0_41 = arith.constant 0 : index
    %c3_42 = arith.constant 3 : index
    %105 = memref.load %arg2[%c0_41, %c3_42] : memref<16x4xf32, #tpu.memory_space<smem>>
    %106 = vector.extract_strided_slice %0 {offsets = [0, 0], sizes = [1, 2], strides = [1, 1]} : vector<6x2xf32> to vector<1x2xf32>
    %107 = vector.broadcast %105 : f32 to vector<1x2xf32>
    %108 = arith.mulf %107, %106 : vector<1x2xf32>
    %109 = arith.addf %104, %108 : vector<1x2xf32>
    %c1_43 = arith.constant 1 : index
    %c3_44 = arith.constant 3 : index
    %110 = memref.load %arg2[%c1_43, %c3_44] : memref<16x4xf32, #tpu.memory_space<smem>>
    %111 = vector.extract_strided_slice %0 {offsets = [1, 0], sizes = [1, 2], strides = [1, 1]} : vector<6x2xf32> to vector<1x2xf32>
    %112 = vector.broadcast %110 : f32 to vector<1x2xf32>
    %113 = arith.mulf %112, %111 : vector<1x2xf32>
    %114 = arith.addf %109, %113 : vector<1x2xf32>
    %c2_45 = arith.constant 2 : index
    %c3_46 = arith.constant 3 : index
    %115 = memref.load %arg2[%c2_45, %c3_46] : memref<16x4xf32, #tpu.memory_space<smem>>
    %116 = vector.extract_strided_slice %0 {offsets = [2, 0], sizes = [1, 2], strides = [1, 1]} : vector<6x2xf32> to vector<1x2xf32>
    %117 = vector.broadcast %115 : f32 to vector<1x2xf32>
    %118 = arith.mulf %117, %116 : vector<1x2xf32>
    %119 = arith.addf %114, %118 : vector<1x2xf32>
    %c3_47 = arith.constant 3 : index
    %c3_48 = arith.constant 3 : index
    %120 = memref.load %arg2[%c3_47, %c3_48] : memref<16x4xf32, #tpu.memory_space<smem>>
    %121 = vector.extract_strided_slice %0 {offsets = [3, 0], sizes = [1, 2], strides = [1, 1]} : vector<6x2xf32> to vector<1x2xf32>
    %122 = vector.broadcast %120 : f32 to vector<1x2xf32>
    %123 = arith.mulf %122, %121 : vector<1x2xf32>
    %124 = arith.addf %119, %123 : vector<1x2xf32>
    %c4_49 = arith.constant 4 : index
    %c3_50 = arith.constant 3 : index
    %125 = memref.load %arg2[%c4_49, %c3_50] : memref<16x4xf32, #tpu.memory_space<smem>>
    %126 = vector.extract_strided_slice %0 {offsets = [4, 0], sizes = [1, 2], strides = [1, 1]} : vector<6x2xf32> to vector<1x2xf32>
    %127 = vector.broadcast %125 : f32 to vector<1x2xf32>
    %128 = arith.mulf %127, %126 : vector<1x2xf32>
    %129 = arith.addf %124, %128 : vector<1x2xf32>
    %c5_51 = arith.constant 5 : index
    %c3_52 = arith.constant 3 : index
    %130 = memref.load %arg2[%c5_51, %c3_52] : memref<16x4xf32, #tpu.memory_space<smem>>
    %131 = vector.extract_strided_slice %0 {offsets = [5, 0], sizes = [1, 2], strides = [1, 1]} : vector<6x2xf32> to vector<1x2xf32>
    %132 = vector.broadcast %130 : f32 to vector<1x2xf32>
    %133 = arith.mulf %132, %131 : vector<1x2xf32>
    %134 = arith.addf %129, %133 : vector<1x2xf32>
    %cst_53 = arith.constant 0.000000e+00 : f32
    %135 = vector.broadcast %cst_53 : f32 to vector<1x2xf32>
    %136 = arith.maximumf %134, %135 : vector<1x2xf32>
    %c12 = arith.constant 12 : index
    %c0_54 = arith.constant 0 : index
    %137 = memref.load %arg2[%c12, %c0_54] : memref<16x4xf32, #tpu.memory_space<smem>>
    %138 = vector.broadcast %137 : f32 to vector<1x2xf32>
    %c8 = arith.constant 8 : index
    %c0_55 = arith.constant 0 : index
    %139 = memref.load %arg2[%c8, %c0_55] : memref<16x4xf32, #tpu.memory_space<smem>>
    %140 = vector.broadcast %139 : f32 to vector<1x2xf32>
    %141 = arith.mulf %140, %34 : vector<1x2xf32>
    %142 = arith.addf %138, %141 : vector<1x2xf32>
    %c9 = arith.constant 9 : index
    %c0_56 = arith.constant 0 : index
    %143 = memref.load %arg2[%c9, %c0_56] : memref<16x4xf32, #tpu.memory_space<smem>>
    %144 = vector.broadcast %143 : f32 to vector<1x2xf32>
    %145 = arith.mulf %144, %68 : vector<1x2xf32>
    %146 = arith.addf %142, %145 : vector<1x2xf32>
    %c10 = arith.constant 10 : index
    %c0_57 = arith.constant 0 : index
    %147 = memref.load %arg2[%c10, %c0_57] : memref<16x4xf32, #tpu.memory_space<smem>>
    %148 = vector.broadcast %147 : f32 to vector<1x2xf32>
    %149 = arith.mulf %148, %102 : vector<1x2xf32>
    %150 = arith.addf %146, %149 : vector<1x2xf32>
    %c11 = arith.constant 11 : index
    %c0_58 = arith.constant 0 : index
    %151 = memref.load %arg2[%c11, %c0_58] : memref<16x4xf32, #tpu.memory_space<smem>>
    %152 = vector.broadcast %151 : f32 to vector<1x2xf32>
    %153 = arith.mulf %152, %136 : vector<1x2xf32>
    %154 = arith.addf %150, %153 : vector<1x2xf32>
    %c12_59 = arith.constant 12 : index
    %c1_60 = arith.constant 1 : index
    %155 = memref.load %arg2[%c12_59, %c1_60] : memref<16x4xf32, #tpu.memory_space<smem>>
    %156 = vector.broadcast %155 : f32 to vector<1x2xf32>
    %c8_61 = arith.constant 8 : index
    %c1_62 = arith.constant 1 : index
    %157 = memref.load %arg2[%c8_61, %c1_62] : memref<16x4xf32, #tpu.memory_space<smem>>
    %158 = vector.broadcast %157 : f32 to vector<1x2xf32>
    %159 = arith.mulf %158, %34 : vector<1x2xf32>
    %160 = arith.addf %156, %159 : vector<1x2xf32>
    %c9_63 = arith.constant 9 : index
    %c1_64 = arith.constant 1 : index
    %161 = memref.load %arg2[%c9_63, %c1_64] : memref<16x4xf32, #tpu.memory_space<smem>>
    %162 = vector.broadcast %161 : f32 to vector<1x2xf32>
    %163 = arith.mulf %162, %68 : vector<1x2xf32>
    %164 = arith.addf %160, %163 : vector<1x2xf32>
    %c10_65 = arith.constant 10 : index
    %c1_66 = arith.constant 1 : index
    %165 = memref.load %arg2[%c10_65, %c1_66] : memref<16x4xf32, #tpu.memory_space<smem>>
    %166 = vector.broadcast %165 : f32 to vector<1x2xf32>
    %167 = arith.mulf %166, %102 : vector<1x2xf32>
    %168 = arith.addf %164, %167 : vector<1x2xf32>
    %c11_67 = arith.constant 11 : index
    %c1_68 = arith.constant 1 : index
    %169 = memref.load %arg2[%c11_67, %c1_68] : memref<16x4xf32, #tpu.memory_space<smem>>
    %170 = vector.broadcast %169 : f32 to vector<1x2xf32>
    %171 = arith.mulf %170, %136 : vector<1x2xf32>
    %172 = arith.addf %168, %171 : vector<1x2xf32>
    %c12_69 = arith.constant 12 : index
    %c2_70 = arith.constant 2 : index
    %173 = memref.load %arg2[%c12_69, %c2_70] : memref<16x4xf32, #tpu.memory_space<smem>>
    %174 = vector.broadcast %173 : f32 to vector<1x2xf32>
    %c8_71 = arith.constant 8 : index
    %c2_72 = arith.constant 2 : index
    %175 = memref.load %arg2[%c8_71, %c2_72] : memref<16x4xf32, #tpu.memory_space<smem>>
    %176 = vector.broadcast %175 : f32 to vector<1x2xf32>
    %177 = arith.mulf %176, %34 : vector<1x2xf32>
    %178 = arith.addf %174, %177 : vector<1x2xf32>
    %c9_73 = arith.constant 9 : index
    %c2_74 = arith.constant 2 : index
    %179 = memref.load %arg2[%c9_73, %c2_74] : memref<16x4xf32, #tpu.memory_space<smem>>
    %180 = vector.broadcast %179 : f32 to vector<1x2xf32>
    %181 = arith.mulf %180, %68 : vector<1x2xf32>
    %182 = arith.addf %178, %181 : vector<1x2xf32>
    %c10_75 = arith.constant 10 : index
    %c2_76 = arith.constant 2 : index
    %183 = memref.load %arg2[%c10_75, %c2_76] : memref<16x4xf32, #tpu.memory_space<smem>>
    %184 = vector.broadcast %183 : f32 to vector<1x2xf32>
    %185 = arith.mulf %184, %102 : vector<1x2xf32>
    %186 = arith.addf %182, %185 : vector<1x2xf32>
    %c11_77 = arith.constant 11 : index
    %c2_78 = arith.constant 2 : index
    %187 = memref.load %arg2[%c11_77, %c2_78] : memref<16x4xf32, #tpu.memory_space<smem>>
    %188 = vector.broadcast %187 : f32 to vector<1x2xf32>
    %189 = arith.mulf %188, %136 : vector<1x2xf32>
    %190 = arith.addf %186, %189 : vector<1x2xf32>
    %c12_79 = arith.constant 12 : index
    %c3_80 = arith.constant 3 : index
    %191 = memref.load %arg2[%c12_79, %c3_80] : memref<16x4xf32, #tpu.memory_space<smem>>
    %192 = vector.broadcast %191 : f32 to vector<1x2xf32>
    %c8_81 = arith.constant 8 : index
    %c3_82 = arith.constant 3 : index
    %193 = memref.load %arg2[%c8_81, %c3_82] : memref<16x4xf32, #tpu.memory_space<smem>>
    %194 = vector.broadcast %193 : f32 to vector<1x2xf32>
    %195 = arith.mulf %194, %34 : vector<1x2xf32>
    %196 = arith.addf %192, %195 : vector<1x2xf32>
    %c9_83 = arith.constant 9 : index
    %c3_84 = arith.constant 3 : index
    %197 = memref.load %arg2[%c9_83, %c3_84] : memref<16x4xf32, #tpu.memory_space<smem>>
    %198 = vector.broadcast %197 : f32 to vector<1x2xf32>
    %199 = arith.mulf %198, %68 : vector<1x2xf32>
    %200 = arith.addf %196, %199 : vector<1x2xf32>
    %c10_85 = arith.constant 10 : index
    %c3_86 = arith.constant 3 : index
    %201 = memref.load %arg2[%c10_85, %c3_86] : memref<16x4xf32, #tpu.memory_space<smem>>
    %202 = vector.broadcast %201 : f32 to vector<1x2xf32>
    %203 = arith.mulf %202, %102 : vector<1x2xf32>
    %204 = arith.addf %200, %203 : vector<1x2xf32>
    %c11_87 = arith.constant 11 : index
    %c3_88 = arith.constant 3 : index
    %205 = memref.load %arg2[%c11_87, %c3_88] : memref<16x4xf32, #tpu.memory_space<smem>>
    %206 = vector.broadcast %205 : f32 to vector<1x2xf32>
    %207 = arith.mulf %206, %136 : vector<1x2xf32>
    %208 = arith.addf %204, %207 : vector<1x2xf32>
    %209 = tpu.concatenate %154, %172, %190, %208, %154, %172, %190, %208 in 0 : vector<1x2xf32>, vector<1x2xf32>, vector<1x2xf32>, vector<1x2xf32>, vector<1x2xf32>, vector<1x2xf32>, vector<1x2xf32>, vector<1x2xf32> -> vector<8x2xf32>
    %c0_89 = arith.constant 0 : index
    %c0_90 = arith.constant 0 : index
    %210 = vector.load %arg3[%c0_89, %c0_90] : memref<8x2xf32, #tpu.memory_space<vmem>>, vector<8x2xf32>
    tpu.vector_store %arg3[%c0_89, %c0_90], %209 {strides = array<i32>} : memref<8x2xf32, #tpu.memory_space<vmem>>, vector<8x2xf32>,
    return
  }
  func.func @transform_0(%arg0: i32) -> (i32, i32) {
    %c0_i32 = arith.constant 0 : i32
    %c0_i32_0 = arith.constant 0 : i32
    %c0_i32_1 = arith.constant 0 : i32
    return %c0_i32, %c0_i32_0 : i32, i32
  }
  func.func @transform_1(%arg0: i32) -> (i32, i32) {
    %c0_i32 = arith.constant 0 : i32
    %c0_i32_0 = arith.constant 0 : i32
    %c0_i32_1 = arith.constant 0 : i32
    return %c0_i32, %c0_i32_0 : i32, i32
  }
  func.func @transform_2(%arg0: i32) -> (i32, i32) {
    %c0_i32 = arith.constant 0 : i32
    %c0_i32_0 = arith.constant 0 : i32
    %c0_i32_1 = arith.constant 0 : i32
    return %c0_i32, %c0_i32_0 : i32, i32
  }
}

</mosaic_0001>

<llo_original>
// kernel: tpu_custom_call.1
$region0: #{tpu_custom_call.1}
  #allocation0 [shape = 'u32[]', space=smem, size = 0x4, offset = 0x4, fixed_abs, tag = 'smem constant byte address 0x4 - core index']
  #allocation1 [shape = 'u32[72,128]{1,0:T(1,128)}', space=vmem, size = 0x9000, scoped, tag = 'internal scratch']
  %s0 = inlined_call_operand.vmem [shape: f32[6,2], index: 0, kind: input, shape index: {}]
  %s1 = inlined_call_operand.vmem [shape: f32[16,4], index: 1, kind: input, shape index: {}]
  %s2 = inlined_call_operand.vmem [shape: f32[8,2], index: 2, kind: output, shape index: {}]
  %s3 = sld [smem:[#allocation0]]
  $region22: #{tpu_custom_call.1} parent=0
    _
  %s5 = ssub.s32 1, %s3
  %s6 = scalar_select 0, %s5, %s3
  $region1: #{tpu_custom_call.1} parent=0
    #allocation2 [shape = 'u8[8192]{0}', space=smem, size = 0x2000, scoped, tag = 'input window, operand 1, single buffered']
    #allocation3 [shape = 's32[1]{0}', space=sflag, size = 0x4, scoped, tag = 'scoped memory for tpu_custom_call.1']
    %7 = vsyncpa [#allocation3], 0
    // Predicated region
    $region2: #{tpu_custom_call.1} parent=1 // pred_check
      _
    $region3: #{tpu_custom_call.1} parent=1 // pred_check_branch
      %9 = sbr.rel (0) target = $region5
    $region4: #{tpu_custom_call.1} parent=1 // pred_region
      _
    $region5: #{tpu_custom_call.1} parent=1 // pred_fallthru
      _
    // Predicated region
    $region6: #{tpu_custom_call.1} parent=1 // pred_check
      _
    $region7: #{tpu_custom_call.1} parent=1 // pred_check_branch
      %11 = sbr.rel (0) target = $region9
    $region8: #{tpu_custom_call.1} parent=1 // pred_region
      %13 = vsyncadd [#allocation3], 0
      %s14 = sshll.u32 %s1, 4
      %s15 = int_to_ptr.vmem [resolvable:$true] %s14
      %20 = dma.vmem_to_smem %s15, 256, [#allocation2], [#allocation3], 128, 128, 8
    $region9: #{tpu_custom_call.1} parent=1 // pred_fallthru
      _
    // Predicated region
    $region10: #{tpu_custom_call.1} parent=1 // pred_check
      _
    $region11: #{tpu_custom_call.1} parent=1 // pred_check_branch
      %22 = sbr.rel (0) target = $region13
    $region12: #{tpu_custom_call.1} parent=1 // pred_region
      %24 = dma.done [#allocation3], 256
    $region13: #{tpu_custom_call.1} parent=1 // pred_fallthru
      _
    %25 = sfence
    %v26 = vld [vmem:[%s0] sm:$0x3f]
    %s27 = sld [smem:[#allocation2 + $0x300]]
    %v28 = vstv %s27
    %s29 = sld [smem:[#allocation2]]
    %v30 = vstv %s29
    %v31 = vmul.f32 %v30, %v26
    %v32 = vadd.f32 %v28, %v31
    %s33 = sld [smem:[#allocation2 + $0x80]]
    %v34 = vstv %s33
    %v35 = vmul.f32 %v34, %v26
    %v37 = vrot.slane %v35, 1
    %v39 = vadd.f32 %v32, %v37
    %s40 = sld [smem:[#allocation2 + $0x100]]
    %v41 = vstv %s40
    %v42 = vmul.f32 %v41, %v26
    %v44 = vrot.slane %v42, 2
    %v46 = vadd.f32 %v39, %v44
    %s47 = sld [smem:[#allocation2 + $0x180]]
    %v48 = vstv %s47
    %v49 = vmul.f32 %v48, %v26
    %v51 = vrot.slane %v49, 3
    %v53 = vadd.f32 %v46, %v51
    %s54 = sld [smem:[#allocation2 + $0x200]]
    %v55 = vstv %s54
    %v56 = vmul.f32 %v55, %v26
    %v58 = vrot.slane %v56, 4
    %v60 = vadd.f32 %v53, %v58
    %s61 = sld [smem:[#allocation2 + $0x280]]
    %v62 = vstv %s61
    %v63 = vmul.f32 %v62, %v26
    %v65 = vrot.slane %v63, 5
    %v67 = vadd.f32 %v60, %v65
    %v68 = vmax.f32 %v67, 0.0
    %s69 = sld [smem:[#allocation2 + $0x301]]
    %v70 = vstv %s69
    %s71 = sld [smem:[#allocation2 + $0x1]]
    %v72 = vstv %s71
    %v73 = vmul.f32 %v72, %v26
    %v74 = vadd.f32 %v70, %v73
    %s75 = sld [smem:[#allocation2 + $0x81]]
    %v76 = vstv %s75
    %v77 = vmul.f32 %v76, %v26
    %v79 = vrot.slane %v77, 1
    %v81 = vadd.f32 %v74, %v79
    %s82 = sld [smem:[#allocation2 + $0x101]]
    %v83 = vstv %s82
    %v84 = vmul.f32 %v83, %v26
    %v86 = vrot.slane %v84, 2
    %v88 = vadd.f32 %v81, %v86
    %s89 = sld [smem:[#allocation2 + $0x181]]
    %v90 = vstv %s89
    %v91 = vmul.f32 %v90, %v26
    %v93 = vrot.slane %v91, 3
    %v95 = vadd.f32 %v88, %v93
    %s96 = sld [smem:[#allocation2 + $0x201]]
    %v97 = vstv %s96
    %v98 = vmul.f32 %v97, %v26
    %v100 = vrot.slane %v98, 4
    %v102 = vadd.f32 %v95, %v100
    %s103 = sld [smem:[#allocation2 + $0x281]]
    %v104 = vstv %s103
    %v105 = vmul.f32 %v104, %v26
    %v107 = vrot.slane %v105, 5
    %v109 = vadd.f32 %v102, %v107
    %v110 = vmax.f32 %v109, 0.0
    %s111 = sld [smem:[#allocation2 + $0x302]]
    %v112 = vstv %s111
    %s113 = sld [smem:[#allocation2 + $0x2]]
    %v114 = vstv %s113
    %v115 = vmul.f32 %v114, %v26
    %v116 = vadd.f32 %v112, %v115
    %s117 = sld [smem:[#allocation2 + $0x82]]
    %v118 = vstv %s117
    %v119 = vmul.f32 %v118, %v26
    %v121 = vrot.slane %v119, 1
    %v123 = vadd.f32 %v116, %v121
    %s124 = sld [smem:[#allocation2 + $0x102]]
    %v125 = vstv %s124
    %v126 = vmul.f32 %v125, %v26
    %v128 = vrot.slane %v126, 2
    %v130 = vadd.f32 %v123, %v128
    %s131 = sld [smem:[#allocation2 + $0x182]]
    %v132 = vstv %s131
    %v133 = vmul.f32 %v132, %v26
    %v135 = vrot.slane %v133, 3
    %v137 = vadd.f32 %v130, %v135
    %s138 = sld [smem:[#allocation2 + $0x202]]
    %v139 = vstv %s138
    %v140 = vmul.f32 %v139, %v26
    %v142 = vrot.slane %v140, 4
    %v144 = vadd.f32 %v137, %v142
    %s145 = sld [smem:[#allocation2 + $0x282]]
    %v146 = vstv %s145
    %v147 = vmul.f32 %v146, %v26
    %v149 = vrot.slane %v147, 5
    %v151 = vadd.f32 %v144, %v149
    %v152 = vmax.f32 %v151, 0.0
    %s153 = sld [smem:[#allocation2 + $0x303]]
    %v154 = vstv %s153
    %s155 = sld [smem:[#allocation2 + $0x3]]
    %v156 = vstv %s155
    %v157 = vmul.f32 %v156, %v26
    %v158 = vadd.f32 %v154, %v157
    %s159 = sld [smem:[#allocation2 + $0x83]]
    %v160 = vstv %s159
    %v161 = vmul.f32 %v160, %v26
    %v163 = vrot.slane %v161, 1
    %v165 = vadd.f32 %v158, %v163
    %s166 = sld [smem:[#allocation2 + $0x103]]
    %v167 = vstv %s166
    %v168 = vmul.f32 %v167, %v26
    %v170 = vrot.slane %v168, 2
    %v172 = vadd.f32 %v165, %v170
    %s173 = sld [smem:[#allocation2 + $0x183]]
    %v174 = vstv %s173
    %v175 = vmul.f32 %v174, %v26
    %v177 = vrot.slane %v175, 3
    %v179 = vadd.f32 %v172, %v177
    %s180 = sld [smem:[#allocation2 + $0x203]]
    %v181 = vstv %s180
    %v182 = vmul.f32 %v181, %v26
    %v184 = vrot.slane %v182, 4
    %v186 = vadd.f32 %v179, %v184
    %s187 = sld [smem:[#allocation2 + $0x283]]
    %v188 = vstv %s187
    %v189 = vmul.f32 %v188, %v26
    %v191 = vrot.slane %v189, 5
    %v193 = vadd.f32 %v186, %v191
    %v194 = vmax.f32 %v193, 0.0
    %s195 = sld [smem:[#allocation2 + $0x600]]
    %v196 = vstv %s195
    %s197 = sld [smem:[#allocation2 + $0x400]]
    %v198 = vstv %s197
    %v199 = vmul.f32 %v198, %v68
    %v200 = vadd.f32 %v196, %v199
    %s201 = sld [smem:[#allocation2 + $0x480]]
    %v202 = vstv %s201
    %v203 = vmul.f32 %v202, %v110
    %v204 = vadd.f32 %v200, %v203
    %s205 = sld [smem:[#allocation2 + $0x500]]
    %v206 = vstv %s205
    %v207 = vmul.f32 %v206, %v152
    %v208 = vadd.f32 %v204, %v207
    %s209 = sld [smem:[#allocation2 + $0x580]]
    %v210 = vstv %s209
    %v211 = vmul.f32 %v210, %v194
    %v212 = vadd.f32 %v208, %v211
    %s213 = sld [smem:[#allocation2 + $0x601]]
    %v214 = vstv %s213
    %s215 = sld [smem:[#allocation2 + $0x401]]
    %v216 = vstv %s215
    %v217 = vmul.f32 %v216, %v68
    %v218 = vadd.f32 %v214, %v217
    %s219 = sld [smem:[#allocation2 + $0x481]]
    %v220 = vstv %s219
    %v221 = vmul.f32 %v220, %v110
    %v222 = vadd.f32 %v218, %v221
    %s223 = sld [smem:[#allocation2 + $0x501]]
    %v224 = vstv %s223
    %v225 = vmul.f32 %v224, %v152
    %v226 = vadd.f32 %v222, %v225
    %s227 = sld [smem:[#allocation2 + $0x581]]
    %v228 = vstv %s227
    %v229 = vmul.f32 %v228, %v194
    %v230 = vadd.f32 %v226, %v229
    %s231 = sld [smem:[#allocation2 + $0x602]]
    %v232 = vstv %s231
    %s233 = sld [smem:[#allocation2 + $0x402]]
    %v234 = vstv %s233
    %v235 = vmul.f32 %v234, %v68
    %v236 = vadd.f32 %v232, %v235
    %s237 = sld [smem:[#allocation2 + $0x482]]
    %v238 = vstv %s237
    %v239 = vmul.f32 %v238, %v110
    %v240 = vadd.f32 %v236, %v239
    %s241 = sld [smem:[#allocation2 + $0x502]]
    %v242 = vstv %s241
    %v243 = vmul.f32 %v242, %v152
    %v244 = vadd.f32 %v240, %v243
    %s245 = sld [smem:[#allocation2 + $0x582]]
    %v246 = vstv %s245
    %v247 = vmul.f32 %v246, %v194
    %v248 = vadd.f32 %v244, %v247
    %s249 = sld [smem:[#allocation2 + $0x603]]
    %v250 = vstv %s249
    %s251 = sld [smem:[#allocation2 + $0x403]]
    %v252 = vstv %s251
    %v253 = vmul.f32 %v252, %v68
    %v254 = vadd.f32 %v250, %v253
    %s255 = sld [smem:[#allocation2 + $0x483]]
    %v256 = vstv %s255
    %v257 = vmul.f32 %v256, %v110
    %v258 = vadd.f32 %v254, %v257
    %s259 = sld [smem:[#allocation2 + $0x503]]
    %v260 = vstv %s259
    %v261 = vmul.f32 %v260, %v152
    %v262 = vadd.f32 %v258, %v261
    %s263 = sld [smem:[#allocation2 + $0x583]]
    %v264 = vstv %s263
    %v265 = vmul.f32 %v264, %v194
    %v266 = vadd.f32 %v262, %v265
    %v268 = vrot.slane %v230, 7
    %v271 = vrot.slane %v248, 6
    %v274 = vrot.slane %v266, 5
    %v277 = vrot.slane %v212, 4
    %v279 = vrot.slane %v230, 3
    %v281 = vrot.slane %v248, 2
    %v283 = vrot.slane %v266, 1
    %vm285 = vcmask 1040384
    %v286 = vsel %vm285, %v212, %v268
    %vm287 = vcmask 1041408
    %v288 = vsel %vm287, %v286, %v271
    %vm289 = vcmask 1042432
    %v290 = vsel %vm289, %v288, %v274
    %vm291 = vcmask 1043456
    %v292 = vsel %vm291, %v290, %v277
    %vm293 = vcmask 1044480
    %v294 = vsel %vm293, %v292, %v279
    %vm295 = vcmask 1045504
    %v296 = vsel %vm295, %v294, %v281
    %vm297 = vcmask 1046528
    %v298 = vsel %vm297, %v296, %v283
    %vm299 = vcmask 15360
    %300 = vst.msk [vmem:[%s2] sm:$0xff] %vm299, %v298
    // Predicated region
    $region14: #{tpu_custom_call.1} parent=1 // pred_check
      _
    $region15: #{tpu_custom_call.1} parent=1 // pred_check_branch
      %302 = sbr.rel (0) target = $region17
    $region16: #{tpu_custom_call.1} parent=1 // pred_region
      _
    $region17: #{tpu_custom_call.1} parent=1 // pred_fallthru
      _
    // Predicated region
    $region18: #{tpu_custom_call.1} parent=1 // pred_check
      _
    $region19: #{tpu_custom_call.1} parent=1 // pred_check_branch
      %304 = sbr.rel (0) target = $region21
    $region20: #{tpu_custom_call.1} parent=1 // pred_region
      _
    $region21: #{tpu_custom_call.1} parent=1 // pred_fallthru
      _
    %305 = vsyncpa [#allocation3], 1

</llo_original>
